<compile_context>
chip_gen: v6e
topology: v6e:2x2x1
jax: 0.10.0
libtpu: 0.0.40
codegen_flags: <defaults>
</compile_context>

<pallas_src>
import math

import jax
import jax.numpy as jnp
from jax.experimental import pallas as pl
from jax.experimental.pallas import tpu as pltpu


LANE = 128                                  # vreg lane width / minor tile dim
ROW_ALIGN = 32                              # sublane-tile-safe row rounding (f32/bf16/int8)
TARGET_INPUT_BLOCK_BYTES = 4 * 1024 * 1024  # ~4 MiB of input per grid step


def gtconv2_kernel(w_ref, a_ref, o_ref):
    """w_ref: SMEM (C,) softmax(weight); a_ref: VMEM (C, BR, 128); o_ref: VMEM (BR, 128).

    Weighted channel reduction on the VPU: unrolled scalar * (BR, 128) plane
    multiply-adds (C is static and small).
    """
    C = a_ref.shape[0]
    acc = w_ref[0] * a_ref[0]
    for c in range(1, C):
        acc = acc + w_ref[c] * a_ref[c]
    o_ref[...] = acc.astype(o_ref.dtype)


def gtconv2(A_hwc: jax.Array, weight: jax.Array) -> jax.Array:
    """A_hwc: (H, W, C) like the PyTorch input; weight: (C, 1, 1). Returns (H, W)."""
    H, W, C = A_hwc.shape
    S = H * W
    out_dtype = A_hwc.dtype
    itemsize = jnp.dtype(out_dtype).itemsize

    # softmax over the C parameter scalars (== F.softmax(weight, dim=0)),
    # hoisted out of the kernel's sequential grid loop.
    w_sm = jax.nn.softmax(weight.reshape(C).astype(jnp.float32), axis=0)

    # HWC -> (C, H*W)  (mirrors A.permute(2, 0, 1) in the module).
    # TODO(synk): this permute remains a wrapper-side XLA transpose (one extra
    # HBM pass on a memory-bound op); fusing the channel de-interleave into the
    # kernel would need lane-strided loads with no clean Pallas TPU expression.
    A_cs = jnp.transpose(A_hwc.reshape(S, C), (1, 0))

    # Re-tile the flattened spatial axis into lane-dense rows of 128.
    S_pad = pl.cdiv(S, LANE) * LANE
    if S_pad != S:
        A_cs = jnp.pad(A_cs, ((0, 0), (0, S_pad - S)))
    R = S_pad // LANE
    A_crl = A_cs.reshape(C, R, LANE)

    # Rows per block: ~TARGET_INPUT_BLOCK_BYTES of input per step, sublane-aligned.
    br = TARGET_INPUT_BLOCK_BYTES // (C * LANE * itemsize)
    br = max(ROW_ALIGN, (br // ROW_ALIGN) * ROW_ALIGN)
    br = min(br, R)                      # full-dim block is always legal
    grid = (pl.cdiv(R, br),)             # ragged last block is masked by Pallas

    out = pl.pallas_call(
        gtconv2_kernel,
        out_shape=jax.ShapeDtypeStruct((R, LANE), out_dtype),
        grid=grid,
        in_specs=[
            pl.BlockSpec(memory_space=pltpu.MemorySpace.SMEM),   # softmaxed weights (C,)
            pl.BlockSpec((C, br, LANE), lambda i: (0, i, 0)),    # A tile (C, br, 128)
        ],
        out_specs=pl.BlockSpec((br, LANE), lambda i: (i, 0)),
        compiler_params=pltpu.CompilerParams(
            dimension_semantics=("parallel",),
            vmem_limit_bytes=32 * 1024 * 1024,
        ),
    )(w_sm, A_crl)

    return out.reshape(S_pad)[:S].reshape(H, W)


def _reference(A_hwc, weight):
    w_sm = jax.nn.softmax(weight, axis=0)                          # (C,1,1)
    return jnp.sum(w_sm * jnp.transpose(A_hwc, (2, 0, 1)), axis=0)  # (H, W)


if __name__ == "__main__":
    key = jax.random.PRNGKey(0)
    k_w, k_a, k_a2 = jax.random.split(key, 3)

    in_channels, H, W = 4, 16, 16

    # xavier_uniform_ on a (C, 1, 1) tensor: fan_in = 1, fan_out = C
    bound = math.sqrt(3.0) * math.sqrt(2.0 / (1.0 + float(in_channels)))
    weight = jax.random.uniform(
        k_w, (in_channels, 1, 1), jnp.float32, minval=-bound, maxval=bound)

    A = jax.random.normal(k_a, (H, W, in_channels), jnp.float32)

    out = jax.block_until_ready(gtconv2(A, weight))
    assert out.shape == (H, W)
    assert jnp.allclose(out, _reference(A, weight), atol=1e-5, rtol=1e-5), \
        "mismatch vs reference"

    # Second case: H*W not a multiple of 128 exercises the pad / cdiv tiling path.
    H2, W2 = 20, 12
    A2 = jax.random.normal(k_a2, (H2, W2, in_channels), jnp.float32)
    out2 = jax.block_until_ready(gtconv2(A2, weight))
    assert out2.shape == (H2, W2)
    assert jnp.allclose(out2, _reference(A2, weight), atol=1e-5, rtol=1e-5), \
        "mismatch vs reference (padded path)"

    print("KERNEL_OK")
</pallas_src>

<mosaic_0001>
module attributes {stable_mosaic.version = 11 : i64} {
  func.func @gtconv2_kernel(%arg0: i32, %arg1: memref<4xf32, #tpu.memory_space<smem>>, %arg2: memref<4x2x128xf32, #tpu.memory_space<vmem>>, %arg3: memref<2x128xf32, #tpu.memory_space<vmem>>) attributes {dimension_semantics = [#tpu.dimension_semantics<parallel>], iteration_bounds = array<i64: 1>, scalar_prefetch = 0 : i64, scratch_operands = 0 : i64, tpu.core_type = #tpu.core_type<tc>, window_params = [{transform_indices = @transform_0, window_bounds = array<i64: 4>}, {transform_indices = @transform_1, window_bounds = array<i64: 4, 2, 128>}, {transform_indices = @transform_2, window_bounds = array<i64: 2, 128>}]} {
    %c0 = arith.constant 0 : index
    %0 = memref.load %arg1[%c0] : memref<4xf32, #tpu.memory_space<smem>>
    %c0_0 = arith.constant 0 : index
    %c0_1 = arith.constant 0 : index
    %c0_2 = arith.constant 0 : index
    %1 = vector.load %arg2[%c0_0, %c0_1, %c0_2] : memref<4x2x128xf32, #tpu.memory_space<vmem>>, vector<1x2x128xf32>
    %2 = vector.shape_cast %1 : vector<1x2x128xf32> to vector<2x128xf32>
    %3 = vector.broadcast %0 : f32 to vector<2x128xf32>
    %4 = arith.mulf %3, %2 : vector<2x128xf32>
    %c1 = arith.constant 1 : index
    %5 = memref.load %arg1[%c1] : memref<4xf32, #tpu.memory_space<smem>>
    %c1_3 = arith.constant 1 : index
    %c0_4 = arith.constant 0 : index
    %c0_5 = arith.constant 0 : index
    %6 = vector.load %arg2[%c1_3, %c0_4, %c0_5] : memref<4x2x128xf32, #tpu.memory_space<vmem>>, vector<1x2x128xf32>
    %7 = vector.shape_cast %6 : vector<1x2x128xf32> to vector<2x128xf32>
    %8 = vector.broadcast %5 : f32 to vector<2x128xf32>
    %9 = arith.mulf %8, %7 : vector<2x128xf32>
    %10 = arith.addf %4, %9 : vector<2x128xf32>
    %c2 = arith.constant 2 : index
    %11 = memref.load %arg1[%c2] : memref<4xf32, #tpu.memory_space<smem>>
    %c2_6 = arith.constant 2 : index
    %c0_7 = arith.constant 0 : index
    %c0_8 = arith.constant 0 : index
    %12 = vector.load %arg2[%c2_6, %c0_7, %c0_8] : memref<4x2x128xf32, #tpu.memory_space<vmem>>, vector<1x2x128xf32>
    %13 = vector.shape_cast %12 : vector<1x2x128xf32> to vector<2x128xf32>
    %14 = vector.broadcast %11 : f32 to vector<2x128xf32>
    %15 = arith.mulf %14, %13 : vector<2x128xf32>
    %16 = arith.addf %10, %15 : vector<2x128xf32>
    %c3 = arith.constant 3 : index
    %17 = memref.load %arg1[%c3] : memref<4xf32, #tpu.memory_space<smem>>
    %c3_9 = arith.constant 3 : index
    %c0_10 = arith.constant 0 : index
    %c0_11 = arith.constant 0 : index
    %18 = vector.load %arg2[%c3_9, %c0_10, %c0_11] : memref<4x2x128xf32, #tpu.memory_space<vmem>>, vector<1x2x128xf32>
    %19 = vector.shape_cast %18 : vector<1x2x128xf32> to vector<2x128xf32>
    %20 = vector.broadcast %17 : f32 to vector<2x128xf32>
    %21 = arith.mulf %20, %19 : vector<2x128xf32>
    %22 = arith.addf %16, %21 : vector<2x128xf32>
    %c0_12 = arith.constant 0 : index
    %c0_13 = arith.constant 0 : index
    %23 = vector.load %arg3[%c0_12, %c0_13] : memref<2x128xf32, #tpu.memory_space<vmem>>, vector<2x128xf32>
    tpu.vector_store %arg3[%c0_12, %c0_13], %22 {strides = array<i32>} : memref<2x128xf32, #tpu.memory_space<vmem>>, vector<2x128xf32>,
    return
  }
  func.func @transform_0(%arg0: i32) -> i32 {
    %c0_i32 = arith.constant 0 : i32
    %c0_i32_0 = arith.constant 0 : i32
    return %c0_i32 : i32
  }
  func.func @transform_1(%arg0: i32) -> (i32, i32, i32) {
    %c0_i32 = arith.constant 0 : i32
    %c0_i32_0 = arith.constant 0 : i32
    %c0_i32_1 = arith.constant 0 : i32
    return %c0_i32, %arg0, %c0_i32_0 : i32, i32, i32
  }
  func.func @transform_2(%arg0: i32) -> (i32, i32) {
    %c0_i32 = arith.constant 0 : i32
    %c0_i32_0 = arith.constant 0 : i32
    return %arg0, %c0_i32 : i32, i32
  }
}

</mosaic_0001>

<llo_original>
// kernel: tpu_custom_call.1
$region0: #{tpu_custom_call.1}
  #allocation0 [shape = 'u32[]', space=smem, size = 0x4, offset = 0x4, fixed_abs, tag = 'smem constant byte address 0x4 - core index']
  #allocation1 [shape = 'u32[144,128]{1,0:T(1,128)}', space=vmem, size = 0x12000, scoped, tag = 'internal scratch']
  %s0 = inlined_call_operand.hbm [shape: f32[4], index: 0, kind: input, shape index: {}]
  %s1 = inlined_call_operand.hbm [shape: f32[4,2,128], index: 1, kind: input, shape index: {}]
  %s2 = inlined_call_operand.hbm [shape: f32[2,128], index: 2, kind: output, shape index: {}]
  %s3 = sld [smem:[#allocation0]]
  $region26: #{tpu_custom_call.1} parent=0
    _
  %s5 = ssub.s32 1, %s3
  %s6 = scalar_select 0, %s5, %s3
  $region1: #{tpu_custom_call.1} parent=0
    #allocation2 [shape = 'u8[512]{0}', space=smem, size = 0x200, scoped, tag = 'input window, operand 0, single buffered']
    #allocation3 [shape = 's32[1]{0}', space=sflag, size = 0x4, scoped, tag = 'scoped memory for tpu_custom_call.1']
    #allocation4 [shape = 's32[1]{0}', space=sflag, size = 0x4, scoped, tag = 'scoped memory for tpu_custom_call.1']
    #allocation5 [shape = 's32[1]{0}', space=sflag, size = 0x4, scoped, tag = 'scoped memory for tpu_custom_call.1']
    #allocation6 [shape = 'u8[4096]{0}', space=vmem, size = 0x1000, scoped, tag = 'input window, operand 1, single buffered']
    #allocation7 [shape = 'u8[1024]{0}', space=vmem, size = 0x400, scoped, tag = 'output window, operand 0, single buffered']
    %7 = vsyncpa [#allocation5], 0
    %8 = vsyncpa [#allocation3], 0
    %9 = vsyncpa [#allocation4], 0
    // Predicated region
    $region2: #{tpu_custom_call.1} parent=1 // pred_check
      _
    $region3: #{tpu_custom_call.1} parent=1 // pred_check_branch
      %11 = sbr.rel (0) target = $region5
    $region4: #{tpu_custom_call.1} parent=1 // pred_region
      %s13 = ssub.s32 16, 16
      %14 = vsyncadd [#allocation5], %s13
      %17 = dma.hbm_to_smem %s0, 16, [#allocation2], [#allocation5]
    $region5: #{tpu_custom_call.1} parent=1 // pred_fallthru
      _
    // Predicated region
    $region6: #{tpu_custom_call.1} parent=1 // pred_check
      _
    $region7: #{tpu_custom_call.1} parent=1 // pred_check_branch
      %19 = sbr.rel (0) target = $region9
    $region8: #{tpu_custom_call.1} parent=1 // pred_region
      %s21 = ssub.s32 128, 128
      %22 = vsyncadd [#allocation3], %s21
      %s23 = sshll.u32 [#allocation6], 4
      %s24 = int_to_ptr.vmem [resolvable:$true] %s23
      %29 = dma.hbm_to_vmem [thread:$0]  %s1, 128, %s24, [#allocation3], 32, 32, 2
    $region9: #{tpu_custom_call.1} parent=1 // pred_fallthru
      _
    // Predicated region
    $region10: #{tpu_custom_call.1} parent=1 // pred_check
      _
    $region11: #{tpu_custom_call.1} parent=1 // pred_check_branch
      %31 = sbr.rel (0) target = $region13
    $region12: #{tpu_custom_call.1} parent=1 // pred_region
      %32 = dma.done [#allocation5], 16
    $region13: #{tpu_custom_call.1} parent=1 // pred_fallthru
      _
    // Predicated region
    $region14: #{tpu_custom_call.1} parent=1 // pred_check
      _
    $region15: #{tpu_custom_call.1} parent=1 // pred_check_branch
      %34 = sbr.rel (0) target = $region17
    $region16: #{tpu_custom_call.1} parent=1 // pred_region
      %35 = dma.done [#allocation3], 128
    $region17: #{tpu_custom_call.1} parent=1 // pred_fallthru
      _
    %36 = sfence
    %s37 = sld [smem:[#allocation2]]
    %v38 = vld [vmem:[#allocation6] sm:$0x3]
    %v39 = vstv %s37
    %v40 = vmul.f32 %v39, %v38
    %s41 = sld [smem:[#allocation2 + $0x1]]
    %s42 = scalar_lea.vmem [#allocation6], 2
    %v43 = vld [vmem:[%s42] sm:$0x3]
    %v44 = vstv %s41
    %v45 = vmul.f32 %v44, %v43
    %v46 = vadd.f32 %v40, %v45
    %s47 = sld [smem:[#allocation2 + $0x2]]
    %s48 = scalar_lea.vmem [#allocation6], 4
    %v49 = vld [vmem:[%s48] sm:$0x3]
    %v50 = vstv %s47
    %v51 = vmul.f32 %v50, %v49
    %v52 = vadd.f32 %v46, %v51
    %s53 = sld [smem:[#allocation2 + $0x3]]
    %s54 = scalar_lea.vmem [#allocation6], 6
    %v55 = vld [vmem:[%s54] sm:$0x3]
    %v56 = vstv %s53
    %v57 = vmul.f32 %v56, %v55
    %v58 = vadd.f32 %v52, %v57
    %59 = vst [vmem:[#allocation7] sm:$0x3] %v58
    // Predicated region
    $region18: #{tpu_custom_call.1} parent=1 // pred_check
      _
    $region19: #{tpu_custom_call.1} parent=1 // pred_check_branch
      %61 = sbr.rel (0) target = $region21
    $region20: #{tpu_custom_call.1} parent=1 // pred_region
      %s63 = ssub.s32 32, 32
      %64 = vsyncadd [#allocation4], %s63
      %s66 = sshll.u32 [#allocation7], 4
      %s67 = int_to_ptr.vmem [resolvable:$true] %s66
      %69 = dma.vmem_to_hbm [thread:$0]  %s67, 32, %s2, [#allocation4]
    $region21: #{tpu_custom_call.1} parent=1 // pred_fallthru
      _
    // Predicated region
    $region22: #{tpu_custom_call.1} parent=1 // pred_check
      _
    $region23: #{tpu_custom_call.1} parent=1 // pred_check_branch
      %71 = sbr.rel (0) target = $region25
    $region24: #{tpu_custom_call.1} parent=1 // pred_region
      %72 = dma.done [#allocation4], 32
    $region25: #{tpu_custom_call.1} parent=1 // pred_fallthru
      _
    %73 = vsyncpa [#allocation3], 1
    %74 = vsyncpa [#allocation4], 1
    %75 = vsyncpa [#allocation5], 1

</llo_original>
